<compile_context>
chip_gen: v7x
topology: tpu7x:2x2x1
jax: 0.10.0
libtpu: 0.0.40
codegen_flags: <defaults>
</compile_context>

<pallas_src>
import functools

import jax
import jax.numpy as jnp
from jax.experimental import pallas as pl
from jax.experimental.pallas import tpu as pltpu


def _qcritic_kernel(x_ref,
                    w1_ref, b1_ref,
                    w2_ref, b2_ref,
                    w3_ref, b3_ref,
                    w4_ref, b4_ref,
                    out_ref):
    """Fused MLP forward with batch on the lane axis.

    x_ref:   (in_features, TB)        activations, batch on lanes
    w*_ref:  (out_features, in_features)   PyTorch-native weight layout
    b*_ref:  (out_features, 1)         broadcasts along the batch lanes
    out_ref: (out_size, TB)
    """
    x = x_ref[...]                                                   # (in, TB)

    h = jnp.dot(w1_ref[...], x, preferred_element_type=jnp.float32) + b1_ref[...]
    h = jnp.maximum(h, 0.0)

    h = jnp.dot(w2_ref[...], h, preferred_element_type=jnp.float32) + b2_ref[...]
    h = jnp.maximum(h, 0.0)

    h = jnp.dot(w3_ref[...], h, preferred_element_type=jnp.float32) + b3_ref[...]
    h = jnp.maximum(h, 0.0)

    y = jnp.dot(w4_ref[...], h, preferred_element_type=jnp.float32) + b4_ref[...]
    out_ref[...] = y.astype(out_ref.dtype)


@functools.partial(jax.jit, static_argnames=("block_b",))
def qcritic_forward(x, params, *, block_b=256):
    """x: (B, input_size) float32.  params: PyTorch-layout weights/biases.

    block_b: batch tile (lane dim) — must be a multiple of 128; 256+ fills the
    v6e/v7x MXU, 128 suffices on v5e.  VMEM use per step is a few tens of KiB,
    far under the v7x 32 MiB scoped budget.
    """
    B, in_size = x.shape
    out_size = params["w4"].shape[0]
    assert block_b % 128 == 0, "batch tile must be lane-aligned (multiple of 128)"

    # Batch on lanes: transpose once in the wrapper, pad to a full tile grid.
    b_pad = ((B + block_b - 1) // block_b) * block_b
    x_t = x.astype(jnp.float32).T                                    # (in, B)
    if b_pad != B:
        x_t = jnp.pad(x_t, ((0, 0), (0, b_pad - B)))
    num_tiles = b_pad // block_b

    # Weights/biases: full-extent blocks, constant index_map -> VMEM-resident.
    resident = lambda a: pl.BlockSpec(a.shape, lambda i: (0, 0))

    out_t = pl.pallas_call(
        _qcritic_kernel,
        out_shape=jax.ShapeDtypeStruct((out_size, b_pad), jnp.float32),
        grid=(num_tiles,),
        in_specs=[
            pl.BlockSpec((in_size, block_b), lambda i: (0, i)),      # x tile
            resident(params["w1"]), resident(params["b1"]),
            resident(params["w2"]), resident(params["b2"]),
            resident(params["w3"]), resident(params["b3"]),
            resident(params["w4"]), resident(params["b4"]),
        ],
        out_specs=pl.BlockSpec((out_size, block_b), lambda i: (0, i)),
        compiler_params=pltpu.CompilerParams(
            dimension_semantics=("parallel",),        # free 2x on v7x megacore
            vmem_limit_bytes=32 * 1024 * 1024,        # explicit, v7x-safe
        ),
    )(x_t,
      params["w1"], params["b1"],
      params["w2"], params["b2"],
      params["w3"], params["b3"],
      params["w4"], params["b4"])

    return out_t[:, :B].T                                            # (B, out)


def init_qcritic_params(key, input_size, output_size, hidden_size=12):
    """PyTorch nn.Linear default init (U[-1/sqrt(fan_in), 1/sqrt(fan_in)]).

    Weights stored PyTorch-native (out_features, in_features); biases as
    (out_features, 1) so they broadcast along the batch-lane axis in-kernel.
    """
    dims = [(hidden_size, input_size),
            (hidden_size, hidden_size),
            (hidden_size, hidden_size),
            (output_size, hidden_size)]
    params = {}
    keys = jax.random.split(key, 2 * len(dims))
    for i, (fan_out, fan_in) in enumerate(dims):
        bound = 1.0 / (float(fan_in) ** 0.5)
        w = jax.random.uniform(keys[2 * i], (fan_out, fan_in),
                               minval=-bound, maxval=bound, dtype=jnp.float32)
        b = jax.random.uniform(keys[2 * i + 1], (fan_out, 1),
                               minval=-bound, maxval=bound, dtype=jnp.float32)
        params[f"w{i + 1}"] = w
        params[f"b{i + 1}"] = b
    return params


def qcritic_reference(x, params):
    """Pure-JAX reference (same math as the PyTorch module)."""
    h = jnp.maximum(x @ params["w1"].T + params["b1"].T, 0.0)
    h = jnp.maximum(h @ params["w2"].T + params["b2"].T, 0.0)
    h = jnp.maximum(h @ params["w3"].T + params["b3"].T, 0.0)
    return h @ params["w4"].T + params["b4"].T


if __name__ == "__main__":
    key = jax.random.PRNGKey(0)
    k_param, k_x1, k_x2 = jax.random.split(key, 3)

    input_size = 6      # observation dim
    output_size = 4     # number of Q-values
    hidden_size = 12    # module default

    params = init_qcritic_params(k_param, input_size, output_size, hidden_size)

    # Small-batch sanity check (pads to one 128-wide tile, grid=(1,)).
    x_small = jax.random.normal(k_x1, (8, input_size), dtype=jnp.float32)
    out_small = jax.block_until_ready(qcritic_forward(x_small, params, block_b=128))
    ref_small = qcritic_reference(x_small, params)
    assert out_small.shape == (8, output_size)
    assert jnp.allclose(out_small, ref_small, atol=1e-5, rtol=1e-5)

    # Ragged multi-tile batch: exercises the batch grid, padding and
    # VMEM-resident weights across iterations (640 -> 3 tiles of 256).
    x_big = jax.random.normal(k_x2, (640, input_size), dtype=jnp.float32)
    out_big = jax.block_until_ready(qcritic_forward(x_big, params, block_b=256))
    ref_big = qcritic_reference(x_big, params)
    assert out_big.shape == (640, output_size)
    assert jnp.allclose(out_big, ref_big, atol=1e-5, rtol=1e-5)

    print("KERNEL_OK")
</pallas_src>

<mosaic_0001>
module attributes {stable_mosaic.version = 11 : i64} {
  func.func @_qcritic_kernel(%arg0: i32, %arg1: memref<6x128xf32, #tpu.memory_space<vmem>>, %arg2: memref<12x6xf32, #tpu.memory_space<vmem>>, %arg3: memref<12x1xf32, #tpu.memory_space<vmem>>, %arg4: memref<12x12xf32, #tpu.memory_space<vmem>>, %arg5: memref<12x1xf32, #tpu.memory_space<vmem>>, %arg6: memref<12x12xf32, #tpu.memory_space<vmem>>, %arg7: memref<12x1xf32, #tpu.memory_space<vmem>>, %arg8: memref<4x12xf32, #tpu.memory_space<vmem>>, %arg9: memref<4x1xf32, #tpu.memory_space<vmem>>, %arg10: memref<4x128xf32, #tpu.memory_space<vmem>>) attributes {dimension_semantics = [#tpu.dimension_semantics<parallel>], iteration_bounds = array<i64: 1>, scalar_prefetch = 0 : i64, scratch_operands = 0 : i64, tpu.core_type = #tpu.core_type<tc>, window_params = [{transform_indices = @transform_0, window_bounds = array<i64: 6, 128>}, {pipeline_mode = #tpu.pipeline_mode<synchronous>, transform_indices = @transform_1, window_bounds = array<i64: 12, 6>}, {pipeline_mode = #tpu.pipeline_mode<synchronous>, transform_indices = @transform_2, window_bounds = array<i64: 12, 1>}, {pipeline_mode = #tpu.pipeline_mode<synchronous>, transform_indices = @transform_3, window_bounds = array<i64: 12, 12>}, {pipeline_mode = #tpu.pipeline_mode<synchronous>, transform_indices = @transform_4, window_bounds = array<i64: 12, 1>}, {pipeline_mode = #tpu.pipeline_mode<synchronous>, transform_indices = @transform_5, window_bounds = array<i64: 12, 12>}, {pipeline_mode = #tpu.pipeline_mode<synchronous>, transform_indices = @transform_6, window_bounds = array<i64: 12, 1>}, {pipeline_mode = #tpu.pipeline_mode<synchronous>, transform_indices = @transform_7, window_bounds = array<i64: 4, 12>}, {pipeline_mode = #tpu.pipeline_mode<synchronous>, transform_indices = @transform_8, window_bounds = array<i64: 4, 1>}, {transform_indices = @transform_9, window_bounds = array<i64: 4, 128>}]} {
    %c0 = arith.constant 0 : index
    %c0_0 = arith.constant 0 : index
    %0 = vector.load %arg1[%c0, %c0_0] : memref<6x128xf32, #tpu.memory_space<vmem>>, vector<6x128xf32>
    %c0_1 = arith.constant 0 : index
    %c0_2 = arith.constant 0 : index
    %1 = vector.load %arg2[%c0_1, %c0_2] : memref<12x6xf32, #tpu.memory_space<vmem>>, vector<12x6xf32>
    %cst = arith.constant dense<0.000000e+00> : vector<12x128xf32>
    %2 = tpu.matmul %1, %0, %cst {dimension_numbers = #tpu.dot_dimension_numbers<[1], [0], [0], [1], [0, 0, 1, 1], [], []>} : vector<12x6xf32>, vector<6x128xf32>, vector<12x128xf32> -> vector<12x128xf32>
    %c0_3 = arith.constant 0 : index
    %c0_4 = arith.constant 0 : index
    %3 = vector.load %arg3[%c0_3, %c0_4] : memref<12x1xf32, #tpu.memory_space<vmem>>, vector<12x1xf32>
    %4 = vector.broadcast %3 : vector<12x1xf32> to vector<12x128xf32>
    %5 = arith.addf %2, %4 : vector<12x128xf32>
    %cst_5 = arith.constant 0.000000e+00 : f32
    %6 = vector.broadcast %cst_5 : f32 to vector<12x128xf32>
    %7 = arith.maximumf %5, %6 : vector<12x128xf32>
    %c0_6 = arith.constant 0 : index
    %c0_7 = arith.constant 0 : index
    %8 = vector.load %arg4[%c0_6, %c0_7] : memref<12x12xf32, #tpu.memory_space<vmem>>, vector<12x12xf32>
    %cst_8 = arith.constant dense<0.000000e+00> : vector<12x128xf32>
    %9 = tpu.matmul %8, %7, %cst_8 {dimension_numbers = #tpu.dot_dimension_numbers<[1], [0], [0], [1], [0, 0, 1, 1], [], []>} : vector<12x12xf32>, vector<12x128xf32>, vector<12x128xf32> -> vector<12x128xf32>
    %c0_9 = arith.constant 0 : index
    %c0_10 = arith.constant 0 : index
    %10 = vector.load %arg5[%c0_9, %c0_10] : memref<12x1xf32, #tpu.memory_space<vmem>>, vector<12x1xf32>
    %11 = vector.broadcast %10 : vector<12x1xf32> to vector<12x128xf32>
    %12 = arith.addf %9, %11 : vector<12x128xf32>
    %cst_11 = arith.constant 0.000000e+00 : f32
    %13 = vector.broadcast %cst_11 : f32 to vector<12x128xf32>
    %14 = arith.maximumf %12, %13 : vector<12x128xf32>
    %c0_12 = arith.constant 0 : index
    %c0_13 = arith.constant 0 : index
    %15 = vector.load %arg6[%c0_12, %c0_13] : memref<12x12xf32, #tpu.memory_space<vmem>>, vector<12x12xf32>
    %cst_14 = arith.constant dense<0.000000e+00> : vector<12x128xf32>
    %16 = tpu.matmul %15, %14, %cst_14 {dimension_numbers = #tpu.dot_dimension_numbers<[1], [0], [0], [1], [0, 0, 1, 1], [], []>} : vector<12x12xf32>, vector<12x128xf32>, vector<12x128xf32> -> vector<12x128xf32>
    %c0_15 = arith.constant 0 : index
    %c0_16 = arith.constant 0 : index
    %17 = vector.load %arg7[%c0_15, %c0_16] : memref<12x1xf32, #tpu.memory_space<vmem>>, vector<12x1xf32>
    %18 = vector.broadcast %17 : vector<12x1xf32> to vector<12x128xf32>
    %19 = arith.addf %16, %18 : vector<12x128xf32>
    %cst_17 = arith.constant 0.000000e+00 : f32
    %20 = vector.broadcast %cst_17 : f32 to vector<12x128xf32>
    %21 = arith.maximumf %19, %20 : vector<12x128xf32>
    %c0_18 = arith.constant 0 : index
    %c0_19 = arith.constant 0 : index
    %22 = vector.load %arg8[%c0_18, %c0_19] : memref<4x12xf32, #tpu.memory_space<vmem>>, vector<4x12xf32>
    %cst_20 = arith.constant dense<0.000000e+00> : vector<4x128xf32>
    %23 = tpu.matmul %22, %21, %cst_20 {dimension_numbers = #tpu.dot_dimension_numbers<[1], [0], [0], [1], [0, 0, 1, 1], [], []>} : vector<4x12xf32>, vector<12x128xf32>, vector<4x128xf32> -> vector<4x128xf32>
    %c0_21 = arith.constant 0 : index
    %c0_22 = arith.constant 0 : index
    %24 = vector.load %arg9[%c0_21, %c0_22] : memref<4x1xf32, #tpu.memory_space<vmem>>, vector<4x1xf32>
    %25 = vector.broadcast %24 : vector<4x1xf32> to vector<4x128xf32>
    %26 = arith.addf %23, %25 : vector<4x128xf32>
    %c0_23 = arith.constant 0 : index
    %c0_24 = arith.constant 0 : index
    %27 = vector.load %arg10[%c0_23, %c0_24] : memref<4x128xf32, #tpu.memory_space<vmem>>, vector<4x128xf32>
    tpu.vector_store %arg10[%c0_23, %c0_24], %26 {strides = array<i32>} : memref<4x128xf32, #tpu.memory_space<vmem>>, vector<4x128xf32>,
    return
  }
  func.func @transform_0(%arg0: i32) -> (i32, i32) {
    %c0_i32 = arith.constant 0 : i32
    %c0_i32_0 = arith.constant 0 : i32
    return %c0_i32, %arg0 : i32, i32
  }
  func.func @transform_1(%arg0: i32) -> (i32, i32) {
    %c0_i32 = arith.constant 0 : i32
    %c0_i32_0 = arith.constant 0 : i32
    %c0_i32_1 = arith.constant 0 : i32
    return %c0_i32, %c0_i32_0 : i32, i32
  }
  func.func @transform_2(%arg0: i32) -> (i32, i32) {
    %c0_i32 = arith.constant 0 : i32
    %c0_i32_0 = arith.constant 0 : i32
    %c0_i32_1 = arith.constant 0 : i32
    return %c0_i32, %c0_i32_0 : i32, i32
  }
  func.func @transform_3(%arg0: i32) -> (i32, i32) {
    %c0_i32 = arith.constant 0 : i32
    %c0_i32_0 = arith.constant 0 : i32
    %c0_i32_1 = arith.constant 0 : i32
    return %c0_i32, %c0_i32_0 : i32, i32
  }
  func.func @transform_4(%arg0: i32) -> (i32, i32) {
    %c0_i32 = arith.constant 0 : i32
    %c0_i32_0 = arith.constant 0 : i32
    %c0_i32_1 = arith.constant 0 : i32
    return %c0_i32, %c0_i32_0 : i32, i32
  }
  func.func @transform_5(%arg0: i32) -> (i32, i32) {
    %c0_i32 = arith.constant 0 : i32
    %c0_i32_0 = arith.constant 0 : i32
    %c0_i32_1 = arith.constant 0 : i32
    return %c0_i32, %c0_i32_0 : i32, i32
  }
  func.func @transform_6(%arg0: i32) -> (i32, i32) {
    %c0_i32 = arith.constant 0 : i32
    %c0_i32_0 = arith.constant 0 : i32
    %c0_i32_1 = arith.constant 0 : i32
    return %c0_i32, %c0_i32_0 : i32, i32
  }
  func.func @transform_7(%arg0: i32) -> (i32, i32) {
    %c0_i32 = arith.constant 0 : i32
    %c0_i32_0 = arith.constant 0 : i32
    %c0_i32_1 = arith.constant 0 : i32
    return %c0_i32, %c0_i32_0 : i32, i32
  }
  func.func @transform_8(%arg0: i32) -> (i32, i32) {
    %c0_i32 = arith.constant 0 : i32
    %c0_i32_0 = arith.constant 0 : i32
    %c0_i32_1 = arith.constant 0 : i32
    return %c0_i32, %c0_i32_0 : i32, i32
  }
  func.func @transform_9(%arg0: i32) -> (i32, i32) {
    %c0_i32 = arith.constant 0 : i32
    %c0_i32_0 = arith.constant 0 : i32
    return %c0_i32, %arg0 : i32, i32
  }
}

</mosaic_0001>

<llo_original>
// kernel: qcritic_forward.1
$region0: #{qcritic_forward.1}
  #allocation0 [shape = 'u32[]', space=smem, size = 0x4, offset = 0x4, fixed_abs, tag = 'smem constant byte address 0x4 - core index']
  #allocation1 [shape = 'u32[144,128]{1,0:T(1,128)}', space=vmem, size = 0x12000, scoped, tag = 'internal scratch']
  %s0 = inlined_call_operand.vmem [shape: f32[6,128], index: 0, kind: input, shape index: {}]
  %s1 = inlined_call_operand.vmem [shape: f32[12,6], index: 1, kind: input, shape index: {}]
  %s2 = inlined_call_operand.vmem [shape: f32[12,1], index: 2, kind: input, shape index: {}]
  %s3 = inlined_call_operand.vmem [shape: f32[12,12], index: 3, kind: input, shape index: {}]
  %s4 = inlined_call_operand.vmem [shape: f32[12,1], index: 4, kind: input, shape index: {}]
  %s5 = inlined_call_operand.vmem [shape: f32[12,12], index: 5, kind: input, shape index: {}]
  %s6 = inlined_call_operand.vmem [shape: f32[12,1], index: 6, kind: input, shape index: {}]
  %s7 = inlined_call_operand.vmem [shape: f32[4,12], index: 7, kind: input, shape index: {}]
  %s8 = inlined_call_operand.vmem [shape: f32[4,1], index: 8, kind: input, shape index: {}]
  %s9 = inlined_call_operand.vmem [shape: f32[4,128], index: 9, kind: output, shape index: {}]
  %s10 = sld [smem:[#allocation0]]
  $region46: #{qcritic_forward.1} parent=0
    _
  %s12 = ssub.s32 1, %s10
  %s13 = scalar_select 0, %s12, %s10
  // Predicated region
  $region2: #{qcritic_forward.1} parent=0 // pred_check
    _
  $region3: #{qcritic_forward.1} parent=0 // pred_check_branch
    %15 = sbr.rel (0) target = $region5
  $region4: #{qcritic_forward.1} parent=0 // pred_region
    _
  $region5: #{qcritic_forward.1} parent=0 // pred_fallthru
    _
  // Predicated region
  $region6: #{qcritic_forward.1} parent=0 // pred_check
    _
  $region7: #{qcritic_forward.1} parent=0 // pred_check_branch
    %17 = sbr.rel (0) target = $region9
  $region8: #{qcritic_forward.1} parent=0 // pred_region
    _
  $region9: #{qcritic_forward.1} parent=0 // pred_fallthru
    _
  // Predicated region
  $region10: #{qcritic_forward.1} parent=0 // pred_check
    _
  $region11: #{qcritic_forward.1} parent=0 // pred_check_branch
    %19 = sbr.rel (0) target = $region13
  $region12: #{qcritic_forward.1} parent=0 // pred_region
    _
  $region13: #{qcritic_forward.1} parent=0 // pred_fallthru
    _
  // Predicated region
  $region14: #{qcritic_forward.1} parent=0 // pred_check
    _
  $region15: #{qcritic_forward.1} parent=0 // pred_check_branch
    %21 = sbr.rel (0) target = $region17
  $region16: #{qcritic_forward.1} parent=0 // pred_region
    _
  $region17: #{qcritic_forward.1} parent=0 // pred_fallthru
    _
  // Predicated region
  $region18: #{qcritic_forward.1} parent=0 // pred_check
    _
  $region19: #{qcritic_forward.1} parent=0 // pred_check_branch
    %23 = sbr.rel (0) target = $region21
  $region20: #{qcritic_forward.1} parent=0 // pred_region
    _
  $region21: #{qcritic_forward.1} parent=0 // pred_fallthru
    _
  // Predicated region
  $region22: #{qcritic_forward.1} parent=0 // pred_check
    _
  $region23: #{qcritic_forward.1} parent=0 // pred_check_branch
    %25 = sbr.rel (0) target = $region25
  $region24: #{qcritic_forward.1} parent=0 // pred_region
    _
  $region25: #{qcritic_forward.1} parent=0 // pred_fallthru
    _
  // Predicated region
  $region26: #{qcritic_forward.1} parent=0 // pred_check
    _
  $region27: #{qcritic_forward.1} parent=0 // pred_check_branch
    %27 = sbr.rel (0) target = $region29
  $region28: #{qcritic_forward.1} parent=0 // pred_region
    _
  $region29: #{qcritic_forward.1} parent=0 // pred_fallthru
    _
  // Predicated region
  $region30: #{qcritic_forward.1} parent=0 // pred_check
    _
  $region31: #{qcritic_forward.1} parent=0 // pred_check_branch
    %29 = sbr.rel (0) target = $region33
  $region32: #{qcritic_forward.1} parent=0 // pred_region
    _
  $region33: #{qcritic_forward.1} parent=0 // pred_fallthru
    _
  // Predicated region
  $region34: #{qcritic_forward.1} parent=0 // pred_check
    _
  $region35: #{qcritic_forward.1} parent=0 // pred_check_branch
    %31 = sbr.rel (0) target = $region37
  $region36: #{qcritic_forward.1} parent=0 // pred_region
    _
  $region37: #{qcritic_forward.1} parent=0 // pred_fallthru
    _
  %v32 = vld [vmem:[%s0] sm:$0x3f]
  %v33 = vld [vmem:[%s1] sm:$0xff]
  %v34 = vld [vmem:[%s1 + $0x8] sm:$0xf]
  %v35 = vld [vmem:[%s2] sm:$0xff]
  %v36 = vld [vmem:[%s2 + $0x8] sm:$0xf]
  %38 = vset.pattern.permute.xlu0 0
  %39 = vperm.xlu0 %38, %v35
  %v40 = vpop.permute.xlu0 %39
  %43 = vset.pattern.permute.xlu0 0
  %44 = vperm.xlu0 %43, %v36
  %v45 = vpop.permute.xlu0 %44
  %vm47 = vcmask 48128
  %v49 = vsel %vm47, %v33, 0
  %v52 = vsel %vm47, %v34, 0
  %vm54 = vcmask 1045504
  %v56 = vsel %vm54, %v32, 0
  %58 = vmatprep.subr.mxu0 0.0
  %59 = vmatpush1.msra.mxu0 %v56
  %60 = vmatprep.subr.mxu0 0.0
  %61 = vmatpush1.msra.mxu0 0.0
  %62 = vmatprep.subr.mxu0 0.0
  %63 = vmatpush1.msra.mxu0 0.0
  %64 = vmatprep.subr.mxu0 0.0
  %65 = vmatpush1.msra.mxu0 0.0
  %66 = vmatprep.subr.mxu0 0.0
  %67 = vmatpush1.msra.mxu0 0.0
  %68 = vmatprep.subr.mxu0 0.0
  %69 = vmatpush1.msra.mxu0 0.0
  %70 = vmatprep.subr.mxu0 0.0
  %71 = vmatpush1.msra.mxu0 0.0
  %72 = vmatprep.subr.mxu0 0.0
  %73 = vmatpush1.msra.mxu0 0.0
  %74 = vmatprep.subr.mxu0 0.0
  %75 = vmatpush1.msra.mxu0 0.0
  %76 = vmatprep.subr.mxu0 0.0
  %77 = vmatpush1.msra.mxu0 0.0
  %78 = vmatprep.subr.mxu0 0.0
  %79 = vmatpush1.msra.mxu0 0.0
  %80 = vmatprep.subr.mxu0 0.0
  %81 = vmatpush1.msra.mxu0 0.0
  %82 = vmatprep.subr.mxu0 0.0
  %83 = vmatpush1.msra.mxu0 0.0
  %84 = vmatprep.subr.mxu0 0.0
  %85 = vmatpush1.msra.mxu0 0.0
  %86 = vmatprep.subr.mxu0 0.0
  %87 = vmatpush1.msra.mxu0 0.0
  %88 = vmatprep.subr.mxu0 0.0
  %89 = vmatpush1.msra.mxu0 0.0
  %90 = vmatprep.subr.mxu0 0.0
  %91 = vmatpush1.msra.mxu0 0.0
  %92 = vmatprep.subr.mxu0 0.0
  %93 = vmatpush1.msra.mxu0 0.0
  %94 = vmatprep.subr.mxu0 0.0
  %95 = vmatpush1.msra.mxu0 0.0
  %96 = vmatprep.subr.mxu0 0.0
  %97 = vmatpush1.msra.mxu0 0.0
  %98 = vmatprep.subr.mxu0 0.0
  %99 = vmatpush1.msra.mxu0 0.0
  %100 = vmatprep.subr.mxu0 0.0
  %101 = vmatpush1.msra.mxu0 0.0
  %102 = vmatprep.subr.mxu0 0.0
  %103 = vmatpush1.msra.mxu0 0.0
  %104 = vmatprep.subr.mxu0 0.0
  %105 = vmatpush1.msra.mxu0 0.0
  %106 = vmatprep.subr.mxu0 0.0
  %107 = vmatpush1.msra.mxu0 0.0
  %108 = vmatprep.subr.mxu0 0.0
  %109 = vmatpush1.msra.mxu0 0.0
  %110 = vmatprep.subr.mxu0 0.0
  %111 = vmatpush1.msra.mxu0 0.0
  %112 = vmatprep.subr.mxu0 0.0
  %113 = vmatpush1.msra.mxu0 0.0
  %114 = vmatprep.subr.mxu0 0.0
  %115 = vmatpush1.msra.mxu0 0.0
  %116 = vmatprep.subr.mxu0 0.0
  %117 = vmatpush1.msra.mxu0 0.0
  %118 = vmatprep.subr.mxu0 0.0
  %119 = vmatpush1.msra.mxu0 0.0
  %120 = vmatprep.subr.mxu0 0.0
  %121 = vmatpush1.msra.mxu0 0.0
  %122 = vmatprep.mubr.f32.mxu0 0.0
  %123 = vmatmul.mubr.f32.gmra.mrb[0].mxu0 %v49
  %v124 = vpop.f32.mrb[0].mxu0
  %v125 = vadd.f32 %v40, %v124
  %v126 = vpop.f32.mrb[0].mxu0
  %127 = vmatprep.mubr.f32.mxu0 0.0
  %128 = vmatmul.mubr.f32.gmra.mrb[0].mxu0 %v52
  %v129 = vpop.f32.mrb[0].mxu0
  %v130 = vadd.f32 %v45, %v129
  %v131 = vpop.f32.mrb[0].mxu0
  %132 = vdwg.mxu0
  %v133 = vmax.f32 %v125, 0.0
  %v134 = vmax.f32 %v130, 0.0
  %v135 = vld [vmem:[%s3] sm:$0xff]
  %v136 = vld [vmem:[%s3 + $0x8] sm:$0xf]
  %v137 = vld [vmem:[%s4] sm:$0xff]
  %v138 = vld [vmem:[%s4 + $0x8] sm:$0xf]
  %140 = vset.pattern.permute.xlu0 0
  %141 = vperm.xlu0 %140, %v137
  %v142 = vpop.permute.xlu0 %141
  %145 = vset.pattern.permute.xlu0 0
  %146 = vperm.xlu0 %145, %v138
  %v147 = vpop.permute.xlu0 %146
  %vm149 = vcmask 97280
  %v151 = vsel %vm149, %v135, 0
  %v154 = vsel %vm149, %v136, 0
  %vm156 = vcmask 1043456
  %v158 = vsel %vm156, %v134, 0
  %160 = vmatprep.subr.mxu0 0.0
  %161 = vmatpush1.msra.mxu0 %v133
  %162 = vmatprep.subr.mxu0 0.0
  %163 = vmatpush1.msra.mxu0 %v158
  %164 = vmatprep.subr.mxu0 0.0
  %165 = vmatpush1.msra.mxu0 0.0
  %166 = vmatprep.subr.mxu0 0.0
  %167 = vmatpush1.msra.mxu0 0.0
  %168 = vmatprep.subr.mxu0 0.0
  %169 = vmatpush1.msra.mxu0 0.0
  %170 = vmatprep.subr.mxu0 0.0
  %171 = vmatpush1.msra.mxu0 0.0
  %172 = vmatprep.subr.mxu0 0.0
  %173 = vmatpush1.msra.mxu0 0.0
  %174 = vmatprep.subr.mxu0 0.0
  %175 = vmatpush1.msra.mxu0 0.0
  %176 = vmatprep.subr.mxu0 0.0
  %177 = vmatpush1.msra.mxu0 0.0
  %178 = vmatprep.subr.mxu0 0.0
  %179 = vmatpush1.msra.mxu0 0.0
  %180 = vmatprep.subr.mxu0 0.0
  %181 = vmatpush1.msra.mxu0 0.0
  %182 = vmatprep.subr.mxu0 0.0
  %183 = vmatpush1.msra.mxu0 0.0
  %184 = vmatprep.subr.mxu0 0.0
  %185 = vmatpush1.msra.mxu0 0.0
  %186 = vmatprep.subr.mxu0 0.0
  %187 = vmatpush1.msra.mxu0 0.0
  %188 = vmatprep.subr.mxu0 0.0
  %189 = vmatpush1.msra.mxu0 0.0
  %190 = vmatprep.subr.mxu0 0.0
  %191 = vmatpush1.msra.mxu0 0.0
  %192 = vmatprep.subr.mxu0 0.0
  %193 = vmatpush1.msra.mxu0 0.0
  %194 = vmatprep.subr.mxu0 0.0
  %195 = vmatpush1.msra.mxu0 0.0
  %196 = vmatprep.subr.mxu0 0.0
  %197 = vmatpush1.msra.mxu0 0.0
  %198 = vmatprep.subr.mxu0 0.0
  %199 = vmatpush1.msra.mxu0 0.0
  %200 = vmatprep.subr.mxu0 0.0
  %201 = vmatpush1.msra.mxu0 0.0
  %202 = vmatprep.subr.mxu0 0.0
  %203 = vmatpush1.msra.mxu0 0.0
  %204 = vmatprep.subr.mxu0 0.0
  %205 = vmatpush1.msra.mxu0 0.0
  %206 = vmatprep.subr.mxu0 0.0
  %207 = vmatpush1.msra.mxu0 0.0
  %208 = vmatprep.subr.mxu0 0.0
  %209 = vmatpush1.msra.mxu0 0.0
  %210 = vmatprep.subr.mxu0 0.0
  %211 = vmatpush1.msra.mxu0 0.0
  %212 = vmatprep.subr.mxu0 0.0
  %213 = vmatpush1.msra.mxu0 0.0
  %214 = vmatprep.subr.mxu0 0.0
  %215 = vmatpush1.msra.mxu0 0.0
  %216 = vmatprep.subr.mxu0 0.0
  %217 = vmatpush1.msra.mxu0 0.0
  %218 = vmatprep.subr.mxu0 0.0
  %219 = vmatpush1.msra.mxu0 0.0
  %220 = vmatprep.subr.mxu0 0.0
  %221 = vmatpush1.msra.mxu0 0.0
  %222 = vmatprep.subr.mxu0 0.0
  %223 = vmatpush1.msra.mxu0 0.0
  %224 = vmatprep.mubr.f32.mxu0 0.0
  %225 = vmatmul.mubr.f32.gmra.mrb[0].mxu0 %v151
  %v226 = vpop.f32.mrb[0].mxu0
  %v227 = vadd.f32 %v142, %v226
  %v228 = vpop.f32.mrb[0].mxu0
  %229 = vmatprep.mubr.f32.mxu0 0.0
  %230 = vmatmul.mubr.f32.gmra.mrb[0].mxu0 %v154
  %v231 = vpop.f32.mrb[0].mxu0
  %v232 = vadd.f32 %v147, %v231
  %v233 = vpop.f32.mrb[0].mxu0
  %234 = vdwg.mxu0
  %v235 = vmax.f32 %v227, 0.0
  %v236 = vmax.f32 %v232, 0.0
  %v237 = vld [vmem:[%s5] sm:$0xff]
  %v238 = vld [vmem:[%s5 + $0x8] sm:$0xf]
  %v239 = vld [vmem:[%s6] sm:$0xff]
  %v240 = vld [vmem:[%s6 + $0x8] sm:$0xf]
  %242 = vset.pattern.permute.xlu0 0
  %243 = vperm.xlu0 %242, %v239
  %v244 = vpop.permute.xlu0 %243
  %247 = vset.pattern.permute.xlu0 0
  %248 = vperm.xlu0 %247, %v240
  %v249 = vpop.permute.xlu0 %248
  %v252 = vsel %vm149, %v237, 0
  %v255 = vsel %vm149, %v238, 0
  %v258 = vsel %vm156, %v236, 0
  %260 = vmatprep.subr.mxu0 0.0
  %261 = vmatpush1.msra.mxu0 %v235
  %262 = vmatprep.subr.mxu0 0.0
  %263 = vmatpush1.msra.mxu0 %v258
  %264 = vmatprep.subr.mxu0 0.0
  %265 = vmatpush1.msra.mxu0 0.0
  %266 = vmatprep.subr.mxu0 0.0
  %267 = vmatpush1.msra.mxu0 0.0
  %268 = vmatprep.subr.mxu0 0.0
  %269 = vmatpush1.msra.mxu0 0.0
  %270 = vmatprep.subr.mxu0 0.0
  %271 = vmatpush1.msra.mxu0 0.0
  %272 = vmatprep.subr.mxu0 0.0
  %273 = vmatpush1.msra.mxu0 0.0
  %274 = vmatprep.subr.mxu0 0.0
  %275 = vmatpush1.msra.mxu0 0.0
  %276 = vmatprep.subr.mxu0 0.0
  %277 = vmatpush1.msra.mxu0 0.0
  %278 = vmatprep.subr.mxu0 0.0
  %279 = vmatpush1.msra.mxu0 0.0
  %280 = vmatprep.subr.mxu0 0.0
  %281 = vmatpush1.msra.mxu0 0.0
  %282 = vmatprep.subr.mxu0 0.0
  %283 = vmatpush1.msra.mxu0 0.0
  %284 = vmatprep.subr.mxu0 0.0
  %285 = vmatpush1.msra.mxu0 0.0
  %286 = vmatprep.subr.mxu0 0.0
  %287 = vmatpush1.msra.mxu0 0.0
  %288 = vmatprep.subr.mxu0 0.0
  %289 = vmatpush1.msra.mxu0 0.0
  %290 = vmatprep.subr.mxu0 0.0
  %291 = vmatpush1.msra.mxu0 0.0
  %292 = vmatprep.subr.mxu0 0.0
  %293 = vmatpush1.msra.mxu0 0.0
  %294 = vmatprep.subr.mxu0 0.0
  %295 = vmatpush1.msra.mxu0 0.0
  %296 = vmatprep.subr.mxu0 0.0
  %297 = vmatpush1.msra.mxu0 0.0
  %298 = vmatprep.subr.mxu0 0.0
  %299 = vmatpush1.msra.mxu0 0.0
  %300 = vmatprep.subr.mxu0 0.0
  %301 = vmatpush1.msra.mxu0 0.0
  %302 = vmatprep.subr.mxu0 0.0
  %303 = vmatpush1.msra.mxu0 0.0
  %304 = vmatprep.subr.mxu0 0.0
  %305 = vmatpush1.msra.mxu0 0.0
  %306 = vmatprep.subr.mxu0 0.0
  %307 = vmatpush1.msra.mxu0 0.0
  %308 = vmatprep.subr.mxu0 0.0
  %309 = vmatpush1.msra.mxu0 0.0
  %310 = vmatprep.subr.mxu0 0.0
  %311 = vmatpush1.msra.mxu0 0.0
  %312 = vmatprep.subr.mxu0 0.0
  %313 = vmatpush1.msra.mxu0 0.0
  %314 = vmatprep.subr.mxu0 0.0
  %315 = vmatpush1.msra.mxu0 0.0
  %316 = vmatprep.subr.mxu0 0.0
  %317 = vmatpush1.msra.mxu0 0.0
  %318 = vmatprep.subr.mxu0 0.0
  %319 = vmatpush1.msra.mxu0 0.0
  %320 = vmatprep.subr.mxu0 0.0
  %321 = vmatpush1.msra.mxu0 0.0
  %322 = vmatprep.subr.mxu0 0.0
  %323 = vmatpush1.msra.mxu0 0.0
  %324 = vmatprep.mubr.f32.mxu0 0.0
  %325 = vmatmul.mubr.f32.gmra.mrb[0].mxu0 %v252
  %v326 = vpop.f32.mrb[0].mxu0
  %v327 = vadd.f32 %v244, %v326
  %v328 = vpop.f32.mrb[0].mxu0
  %329 = vmatprep.mubr.f32.mxu0 0.0
  %330 = vmatmul.mubr.f32.gmra.mrb[0].mxu0 %v255
  %v331 = vpop.f32.mrb[0].mxu0
  %v332 = vadd.f32 %v249, %v331
  %v333 = vpop.f32.mrb[0].mxu0
  %334 = vdwg.mxu0
  %v335 = vmax.f32 %v327, 0.0
  %v336 = vmax.f32 %v332, 0.0
  %v337 = vld [vmem:[%s7] sm:$0xf]
  %v338 = vld [vmem:[%s8] sm:$0xf]
  %340 = vset.pattern.permute.xlu0 0
  %341 = vperm.xlu0 %340, %v338
  %v342 = vpop.permute.xlu0 %341
  %v345 = vsel %vm149, %v337, 0
  %v348 = vsel %vm156, %v336, 0
  %350 = vmatprep.subr.mxu0 0.0
  %351 = vmatpush1.msra.mxu0 %v335
  %352 = vmatprep.subr.mxu0 0.0
  %353 = vmatpush1.msra.mxu0 %v348
  %354 = vmatprep.subr.mxu0 0.0
  %355 = vmatpush1.msra.mxu0 0.0
  %356 = vmatprep.subr.mxu0 0.0
  %357 = vmatpush1.msra.mxu0 0.0
  %358 = vmatprep.subr.mxu0 0.0
  %359 = vmatpush1.msra.mxu0 0.0
  %360 = vmatprep.subr.mxu0 0.0
  %361 = vmatpush1.msra.mxu0 0.0
  %362 = vmatprep.subr.mxu0 0.0
  %363 = vmatpush1.msra.mxu0 0.0
  %364 = vmatprep.subr.mxu0 0.0
  %365 = vmatpush1.msra.mxu0 0.0
  %366 = vmatprep.subr.mxu0 0.0
  %367 = vmatpush1.msra.mxu0 0.0
  %368 = vmatprep.subr.mxu0 0.0
  %369 = vmatpush1.msra.mxu0 0.0
  %370 = vmatprep.subr.mxu0 0.0
  %371 = vmatpush1.msra.mxu0 0.0
  %372 = vmatprep.subr.mxu0 0.0
  %373 = vmatpush1.msra.mxu0 0.0
  %374 = vmatprep.subr.mxu0 0.0
  %375 = vmatpush1.msra.mxu0 0.0
  %376 = vmatprep.subr.mxu0 0.0
  %377 = vmatpush1.msra.mxu0 0.0
  %378 = vmatprep.subr.mxu0 0.0
  %379 = vmatpush1.msra.mxu0 0.0
  %380 = vmatprep.subr.mxu0 0.0
  %381 = vmatpush1.msra.mxu0 0.0
  %382 = vmatprep.subr.mxu0 0.0
  %383 = vmatpush1.msra.mxu0 0.0
  %384 = vmatprep.subr.mxu0 0.0
  %385 = vmatpush1.msra.mxu0 0.0
  %386 = vmatprep.subr.mxu0 0.0
  %387 = vmatpush1.msra.mxu0 0.0
  %388 = vmatprep.subr.mxu0 0.0
  %389 = vmatpush1.msra.mxu0 0.0
  %390 = vmatprep.subr.mxu0 0.0
  %391 = vmatpush1.msra.mxu0 0.0
  %392 = vmatprep.subr.mxu0 0.0
  %393 = vmatpush1.msra.mxu0 0.0
  %394 = vmatprep.subr.mxu0 0.0
  %395 = vmatpush1.msra.mxu0 0.0
  %396 = vmatprep.subr.mxu0 0.0
  %397 = vmatpush1.msra.mxu0 0.0
  %398 = vmatprep.subr.mxu0 0.0
  %399 = vmatpush1.msra.mxu0 0.0
  %400 = vmatprep.subr.mxu0 0.0
  %401 = vmatpush1.msra.mxu0 0.0
  %402 = vmatprep.subr.mxu0 0.0
  %403 = vmatpush1.msra.mxu0 0.0
  %404 = vmatprep.subr.mxu0 0.0
  %405 = vmatpush1.msra.mxu0 0.0
  %406 = vmatprep.subr.mxu0 0.0
  %407 = vmatpush1.msra.mxu0 0.0
  %408 = vmatprep.subr.mxu0 0.0
  %409 = vmatpush1.msra.mxu0 0.0
  %410 = vmatprep.subr.mxu0 0.0
  %411 = vmatpush1.msra.mxu0 0.0
  %412 = vmatprep.subr.mxu0 0.0
  %413 = vmatpush1.msra.mxu0 0.0
  %414 = vmatprep.mubr.f32.mxu0 0.0
  %415 = vmatmul.mubr.f32.gmra.mrb[0].mxu0 %v345
  %v416 = vpop.f32.mrb[0].mxu0
  %v417 = vadd.f32 %v342, %v416
  %v418 = vpop.f32.mrb[0].mxu0
  %419 = vdwg.mxu0
  %420 = vst [vmem:[%s9] sm:$0xf] %v417
  // Predicated region
  $region38: #{qcritic_forward.1} parent=0 // pred_check
    _
  $region39: #{qcritic_forward.1} parent=0 // pred_check_branch
    %422 = sbr.rel (0) target = $region41
  $region40: #{qcritic_forward.1} parent=0 // pred_region
    _
  $region41: #{qcritic_forward.1} parent=0 // pred_fallthru
    _
  // Predicated region
  $region42: #{qcritic_forward.1} parent=0 // pred_check
    _
  $region43: #{qcritic_forward.1} parent=0 // pred_check_branch
    %424 = sbr.rel (0) target = $region45
  $region44: #{qcritic_forward.1} parent=0 // pred_region
    _
  $region45: #{qcritic_forward.1} parent=0 // pred_fallthru
    _

</llo_original>
